<compile_context>
chip_gen: v5e
topology: v5e:2x2
jax: 0.10.0
libtpu: 0.0.40
codegen_flags: <defaults>
</compile_context>

<pallas_src>
import jax
import jax.numpy as jnp
import numpy as np
from jax.experimental import pallas as pl
from jax.experimental.pallas import tpu as pltpu

GUIDE_CH = 16
X_CH = 16
BN_EPS = 1e-5
LEAKY_SLOPE = 0.2

ROW_TILE_CAP = 256    # sublane rows per modulate tile (multiple of 8)
HW_TILE_CAP = 2048    # lanes per modulate tile (multiple of 128)


# ---------------------------------------------------------------------------
# 1) Gate prologue (ungridded, tiny):
#    scale = 1 + sigmoid(LeakyReLU(BN(y @ W1 + b1)) @ W2 + b2)
# ---------------------------------------------------------------------------
def gate_kernel(y_ref, w1_ref, b1_ref, g_ref, be_ref, w2_ref, b2_ref, scale_ref):
    y = y_ref[...]                                              # (B, Cg)
    h = jnp.dot(y, w1_ref[...], preferred_element_type=jnp.float32) + b1_ref[...]

    # BatchNorm1d in train mode: biased batch statistics.
    mean = jnp.mean(h, axis=0, keepdims=True)
    var = jnp.mean((h - mean) ** 2, axis=0, keepdims=True)
    hn = (h - mean) * jax.lax.rsqrt(var + BN_EPS) * g_ref[...] + be_ref[...]

    # LeakyReLU(0.2)
    hl = jnp.where(hn >= 0, hn, LEAKY_SLOPE * hn)

    # Linear -> Sigmoid, fold "x + x*s" into one multiply: scale = 1 + s
    s = jax.nn.sigmoid(
        jnp.dot(hl, w2_ref[...], preferred_element_type=jnp.float32) + b2_ref[...]
    )                                                           # (B, Cx)
    scale_ref[...] = 1.0 + s


# ---------------------------------------------------------------------------
# 2) Gridded, pipelined elementwise modulate: out = x * scale
#    (scale broadcast along the spatial/lane axis)
# ---------------------------------------------------------------------------
def modulate_kernel(scale_ref, x_ref, o_ref):
    # scale_ref: (ROW_TILE, 1)    x_ref / o_ref: (ROW_TILE, HW_TILE)
    o_ref[...] = x_ref[...] * scale_ref[...]


def guide_base_forward(x_base, y_guide, params):
    """x_base: (B, C, H, W) NCHW; y_guide: (B, Cg, 1, 1) or (B, Cg)."""
    B, C, H, W = x_base.shape
    HW = H * W
    ROWS = B * C

    y2d = y_guide.reshape(y_guide.shape[0], y_guide.shape[1]).astype(jnp.float32)
    x_flat = x_base.reshape(ROWS, HW)

    w1, b1, gamma, beta, w2, b2 = params
    vmem = pl.BlockSpec(memory_space=pltpu.MemorySpace.VMEM)

    # --- gate (tiny, single invocation) ---
    scale = pl.pallas_call(
        gate_kernel,
        out_shape=jax.ShapeDtypeStruct((B, C), jnp.float32),
        in_specs=[vmem] * 7,
        out_specs=vmem,
    )(y2d, w1, b1, gamma, beta, w2, b2)
    scale2d = scale.reshape(ROWS, 1).astype(x_base.dtype)   # tiny reshape in XLA

    # --- modulate (gridded, lane-dense, double-buffered) ---
    row_tile = ROWS if ROWS <= ROW_TILE_CAP else ROW_TILE_CAP   # full axis or mult-of-8
    hw_tile = HW if HW <= HW_TILE_CAP else HW_TILE_CAP          # full axis or mult-of-128
    grid = (pl.cdiv(ROWS, row_tile), pl.cdiv(HW, hw_tile))

    out_flat = pl.pallas_call(
        modulate_kernel,
        out_shape=jax.ShapeDtypeStruct((ROWS, HW), x_base.dtype),
        grid=grid,
        in_specs=[
            pl.BlockSpec((row_tile, 1), lambda r, t: (r, 0)),        # scale
            pl.BlockSpec((row_tile, hw_tile), lambda r, t: (r, t)),  # x
        ],
        out_specs=pl.BlockSpec((row_tile, hw_tile), lambda r, t: (r, t)),
        compiler_params=pltpu.CompilerParams(
            dimension_semantics=("parallel", "parallel"),
        ),
    )(scale2d, x_flat)

    return out_flat.reshape(B, C, H, W)


def init_params(key, guide_channel=GUIDE_CH, x_channel=X_CH):
    """Deterministic synthetic parameters matching the module's shapes."""
    hid = guide_channel // 2
    k1, k2, k3, k4 = jax.random.split(key, 4)
    bound1 = 1.0 / np.sqrt(guide_channel)
    bound2 = 1.0 / np.sqrt(hid)
    w1 = jax.random.uniform(k1, (guide_channel, hid), jnp.float32, -bound1, bound1)
    b1 = jax.random.uniform(k2, (1, hid), jnp.float32, -bound1, bound1)
    gamma = jnp.ones((1, hid), jnp.float32)
    beta = jnp.zeros((1, hid), jnp.float32)
    w2 = jax.random.uniform(k3, (hid, x_channel), jnp.float32, -bound2, bound2)
    b2 = jax.random.uniform(k4, (1, x_channel), jnp.float32, -bound2, bound2)
    return (w1, b1, gamma, beta, w2, b2)


def reference_forward(x_base, y_guide, params):
    """Pure-JAX reference (mirrors the PyTorch module in train mode)."""
    w1, b1, gamma, beta, w2, b2 = params
    y = y_guide.reshape(y_guide.shape[0], y_guide.shape[1])
    h = y @ w1 + b1
    mean = h.mean(axis=0, keepdims=True)
    var = ((h - mean) ** 2).mean(axis=0, keepdims=True)
    hn = (h - mean) / jnp.sqrt(var + BN_EPS) * gamma + beta
    hl = jnp.where(hn >= 0, hn, LEAKY_SLOPE * hn)
    s = jax.nn.sigmoid(hl @ w2 + b2)
    s = s[:, :, None, None]
    return x_base + x_base * s


if __name__ == "__main__":
    key = jax.random.PRNGKey(0)
    kx, ky, kp = jax.random.split(key, 3)

    B, C, H, W = 2, X_CH, 16, 16
    x_base = jax.random.normal(kx, (B, C, H, W), jnp.float32)
    y_guide = jax.random.normal(ky, (B, GUIDE_CH, 1, 1), jnp.float32)
    params = init_params(kp)

    out = guide_base_forward(x_base, y_guide, params)
    out = jax.block_until_ready(out)

    ref = reference_forward(x_base, y_guide, params)
    np.testing.assert_allclose(np.asarray(out), np.asarray(ref),
                               rtol=1e-5, atol=1e-5)

    print("KERNEL_OK")
</pallas_src>

<mosaic_0001>
module attributes {stable_mosaic.version = 11 : i64} {
  func.func @gate_kernel(%arg0: memref<2x16xf32, #tpu.memory_space<vmem>>, %arg1: memref<16x8xf32, #tpu.memory_space<vmem>>, %arg2: memref<1x8xf32, #tpu.memory_space<vmem>>, %arg3: memref<1x8xf32, #tpu.memory_space<vmem>>, %arg4: memref<1x8xf32, #tpu.memory_space<vmem>>, %arg5: memref<8x16xf32, #tpu.memory_space<vmem>>, %arg6: memref<1x16xf32, #tpu.memory_space<vmem>>, %arg7: memref<2x16xf32, #tpu.memory_space<vmem>>) attributes {dimension_semantics = [], scalar_prefetch = 0 : i64, scratch_operands = 0 : i64, tpu.core_type = #tpu.core_type<tc>} {
    %c0 = arith.constant 0 : index
    %c0_0 = arith.constant 0 : index
    %0 = vector.load %arg0[%c0, %c0_0] : memref<2x16xf32, #tpu.memory_space<vmem>>, vector<2x16xf32>
    %c0_1 = arith.constant 0 : index
    %c0_2 = arith.constant 0 : index
    %1 = vector.load %arg1[%c0_1, %c0_2] : memref<16x8xf32, #tpu.memory_space<vmem>>, vector<16x8xf32>
    %cst = arith.constant dense<0.000000e+00> : vector<2x8xf32>
    %2 = tpu.matmul %0, %1, %cst {dimension_numbers = #tpu.dot_dimension_numbers<[1], [0], [0], [1], [0, 0, 1, 1], [], []>} : vector<2x16xf32>, vector<16x8xf32>, vector<2x8xf32> -> vector<2x8xf32>
    %c0_3 = arith.constant 0 : index
    %c0_4 = arith.constant 0 : index
    %3 = vector.load %arg2[%c0_3, %c0_4] : memref<1x8xf32, #tpu.memory_space<vmem>>, vector<1x8xf32>
    %4 = vector.broadcast %3 : vector<1x8xf32> to vector<2x8xf32>
    %5 = arith.addf %2, %4 : vector<2x8xf32>
    %cst_5 = arith.constant dense<0.000000e+00> : vector<8xf32>
    %6 = vector.multi_reduction <add>, %5, %cst_5 [0] : vector<2x8xf32> to vector<8xf32>
    %7 = vector.shape_cast %6 : vector<8xf32> to vector<1x8xf32>
    %cst_6 = arith.constant 2.000000e+00 : f32
    %8 = vector.broadcast %cst_6 : f32 to vector<1x8xf32>
    %9 = arith.divf %7, %8 : vector<1x8xf32>
    %10 = vector.broadcast %9 : vector<1x8xf32> to vector<2x8xf32>
    %11 = arith.subf %5, %10 : vector<2x8xf32>
    %12 = arith.mulf %11, %11 : vector<2x8xf32>
    %cst_7 = arith.constant dense<0.000000e+00> : vector<8xf32>
    %13 = vector.multi_reduction <add>, %12, %cst_7 [0] : vector<2x8xf32> to vector<8xf32>
    %14 = vector.shape_cast %13 : vector<8xf32> to vector<1x8xf32>
    %cst_8 = arith.constant 2.000000e+00 : f32
    %15 = vector.broadcast %cst_8 : f32 to vector<1x8xf32>
    %16 = arith.divf %14, %15 : vector<1x8xf32>
    %17 = vector.broadcast %9 : vector<1x8xf32> to vector<2x8xf32>
    %18 = arith.subf %5, %17 : vector<2x8xf32>
    %cst_9 = arith.constant 9.99999974E-6 : f32
    %19 = vector.broadcast %cst_9 : f32 to vector<1x8xf32>
    %20 = arith.addf %16, %19 : vector<1x8xf32>
    %21 = math.rsqrt %20 : vector<1x8xf32>
    %22 = vector.broadcast %21 : vector<1x8xf32> to vector<2x8xf32>
    %23 = arith.mulf %18, %22 : vector<2x8xf32>
    %c0_10 = arith.constant 0 : index
    %c0_11 = arith.constant 0 : index
    %24 = vector.load %arg3[%c0_10, %c0_11] : memref<1x8xf32, #tpu.memory_space<vmem>>, vector<1x8xf32>
    %25 = vector.broadcast %24 : vector<1x8xf32> to vector<2x8xf32>
    %26 = arith.mulf %23, %25 : vector<2x8xf32>
    %c0_12 = arith.constant 0 : index
    %c0_13 = arith.constant 0 : index
    %27 = vector.load %arg4[%c0_12, %c0_13] : memref<1x8xf32, #tpu.memory_space<vmem>>, vector<1x8xf32>
    %28 = vector.broadcast %27 : vector<1x8xf32> to vector<2x8xf32>
    %29 = arith.addf %26, %28 : vector<2x8xf32>
    %cst_14 = arith.constant 0.000000e+00 : f32
    %30 = vector.broadcast %cst_14 : f32 to vector<2x8xf32>
    %31 = arith.cmpf oge, %29, %30 : vector<2x8xf32>
    %cst_15 = arith.constant 2.000000e-01 : f32
    %32 = vector.broadcast %cst_15 : f32 to vector<2x8xf32>
    %33 = arith.mulf %32, %29 : vector<2x8xf32>
    %34 = arith.select %31, %29, %33 : vector<2x8xi1>, vector<2x8xf32>
    %c0_16 = arith.constant 0 : index
    %c0_17 = arith.constant 0 : index
    %35 = vector.load %arg5[%c0_16, %c0_17] : memref<8x16xf32, #tpu.memory_space<vmem>>, vector<8x16xf32>
    %cst_18 = arith.constant dense<0.000000e+00> : vector<2x16xf32>
    %36 = tpu.matmul %34, %35, %cst_18 {dimension_numbers = #tpu.dot_dimension_numbers<[1], [0], [0], [1], [0, 0, 1, 1], [], []>} : vector<2x8xf32>, vector<8x16xf32>, vector<2x16xf32> -> vector<2x16xf32>
    %c0_19 = arith.constant 0 : index
    %c0_20 = arith.constant 0 : index
    %37 = vector.load %arg6[%c0_19, %c0_20] : memref<1x16xf32, #tpu.memory_space<vmem>>, vector<1x16xf32>
    %38 = vector.broadcast %37 : vector<1x16xf32> to vector<2x16xf32>
    %39 = arith.addf %36, %38 : vector<2x16xf32>
    %40 = arith.negf %39 : vector<2x16xf32>
    %41 = math.exp %40 : vector<2x16xf32>
    %cst_21 = arith.constant 1.000000e+00 : f32
    %42 = vector.broadcast %cst_21 : f32 to vector<2x16xf32>
    %43 = arith.addf %42, %41 : vector<2x16xf32>
    %44 = arith.divf %42, %43 : vector<2x16xf32>
    %cst_22 = arith.constant 1.000000e+00 : f32
    %45 = vector.broadcast %cst_22 : f32 to vector<2x16xf32>
    %46 = arith.addf %45, %44 : vector<2x16xf32>
    %c0_23 = arith.constant 0 : index
    %c0_24 = arith.constant 0 : index
    %47 = vector.load %arg7[%c0_23, %c0_24] : memref<2x16xf32, #tpu.memory_space<vmem>>, vector<2x16xf32>
    tpu.vector_store %arg7[%c0_23, %c0_24], %46 {strides = array<i32>} : memref<2x16xf32, #tpu.memory_space<vmem>>, vector<2x16xf32>,
    return
  }
}

</mosaic_0001>

<llo_original>
// kernel: tpu_custom_call.1
$region0: #{tpu_custom_call.1}
  #allocation0 [shape = 'u32[]', space=smem, size = 0x4, offset = 0x4, fixed_abs, tag = 'smem constant byte address 0x4 - core index']
  #allocation1 [shape = 'u32[72,128]{1,0:T(1,128)}', space=vmem, size = 0x9000, scoped, tag = 'internal scratch']
  %s0 = inlined_call_operand.vmem [shape: f32[2,16], index: 0, kind: input, shape index: {}]
  %s1 = inlined_call_operand.vmem [shape: f32[16,8], index: 1, kind: input, shape index: {}]
  %s2 = inlined_call_operand.vmem [shape: f32[1,8], index: 2, kind: input, shape index: {}]
  %s3 = inlined_call_operand.vmem [shape: f32[1,8], index: 3, kind: input, shape index: {}]
  %s4 = inlined_call_operand.vmem [shape: f32[1,8], index: 4, kind: input, shape index: {}]
  %s5 = inlined_call_operand.vmem [shape: f32[8,16], index: 5, kind: input, shape index: {}]
  %s6 = inlined_call_operand.vmem [shape: f32[1,16], index: 6, kind: input, shape index: {}]
  %s7 = inlined_call_operand.hbm [shape: f32[2,16], index: 7, kind: output, shape index: {}]
  %s8 = sld [smem:[#allocation0]]
  $region38: #{tpu_custom_call.1} parent=0
    _
  %s10 = ssub.s32 1, %s8
  %s11 = scalar_select 0, %s10, %s8
  $region1: #{tpu_custom_call.1} parent=0
    #allocation2 [shape = 'u8[1024]{0}', space=vmem, size = 0x400, scoped, tag = 'output window, operand 0, single buffered']
    #allocation3 [shape = 's32[1]{0}', space=sflag, size = 0x4, scoped, tag = 'scoped memory for tpu_custom_call.1']
    %12 = vsyncpa [#allocation3], 0
    // Predicated region
    $region2: #{tpu_custom_call.1} parent=1 // pred_check
      _
    $region3: #{tpu_custom_call.1} parent=1 // pred_check_branch
      %14 = sbr.rel (0) target = $region5
    $region4: #{tpu_custom_call.1} parent=1 // pred_region
      _
    $region5: #{tpu_custom_call.1} parent=1 // pred_fallthru
      _
    // Predicated region
    $region6: #{tpu_custom_call.1} parent=1 // pred_check
      _
    $region7: #{tpu_custom_call.1} parent=1 // pred_check_branch
      %16 = sbr.rel (0) target = $region9
    $region8: #{tpu_custom_call.1} parent=1 // pred_region
      _
    $region9: #{tpu_custom_call.1} parent=1 // pred_fallthru
      _
    // Predicated region
    $region10: #{tpu_custom_call.1} parent=1 // pred_check
      _
    $region11: #{tpu_custom_call.1} parent=1 // pred_check_branch
      %18 = sbr.rel (0) target = $region13
    $region12: #{tpu_custom_call.1} parent=1 // pred_region
      _
    $region13: #{tpu_custom_call.1} parent=1 // pred_fallthru
      _
    // Predicated region
    $region14: #{tpu_custom_call.1} parent=1 // pred_check
      _
    $region15: #{tpu_custom_call.1} parent=1 // pred_check_branch
      %20 = sbr.rel (0) target = $region17
    $region16: #{tpu_custom_call.1} parent=1 // pred_region
      _
    $region17: #{tpu_custom_call.1} parent=1 // pred_fallthru
      _
    // Predicated region
    $region18: #{tpu_custom_call.1} parent=1 // pred_check
      _
    $region19: #{tpu_custom_call.1} parent=1 // pred_check_branch
      %22 = sbr.rel (0) target = $region21
    $region20: #{tpu_custom_call.1} parent=1 // pred_region
      _
    $region21: #{tpu_custom_call.1} parent=1 // pred_fallthru
      _
    // Predicated region
    $region22: #{tpu_custom_call.1} parent=1 // pred_check
      _
    $region23: #{tpu_custom_call.1} parent=1 // pred_check_branch
      %24 = sbr.rel (0) target = $region25
    $region24: #{tpu_custom_call.1} parent=1 // pred_region
      _
    $region25: #{tpu_custom_call.1} parent=1 // pred_fallthru
      _
    // Predicated region
    $region26: #{tpu_custom_call.1} parent=1 // pred_check
      _
    $region27: #{tpu_custom_call.1} parent=1 // pred_check_branch
      %26 = sbr.rel (0) target = $region29
    $region28: #{tpu_custom_call.1} parent=1 // pred_region
      _
    $region29: #{tpu_custom_call.1} parent=1 // pred_fallthru
      _
    %v27 = vld [vmem:[%s0] sm:$0x3]
    %v28 = vld [vmem:[%s1] sm:$0xff]
    %v29 = vld [vmem:[%s1 + $0x8] sm:$0xff]
    %v30 = vld [vmem:[%s2] sm:$0x1]
    %v32 = vperm.slane %v30, 0
    %vm34 = vcmask 130048
    %v36 = vsel %vm34, %v27, 0
    %38 = vmatpush.msra.mxu0 0.0
    %39 = vmatpush.msra.mxu0 0.0
    %40 = vmatpush.msra.mxu0 0.0
    %41 = vmatpush.msra.mxu0 0.0
    %42 = vmatpush.msra.mxu0 0.0
    %43 = vmatpush.msra.mxu0 0.0
    %44 = vmatpush.msra.mxu0 0.0
    %45 = vmatpush.msra.mxu0 0.0
    %46 = vmatpush.msra.mxu0 0.0
    %47 = vmatpush.msra.mxu0 0.0
    %48 = vmatpush.msra.mxu0 0.0
    %49 = vmatpush.msra.mxu0 0.0
    %50 = vmatpush.msra.mxu0 0.0
    %51 = vmatpush.msra.mxu0 0.0
    %52 = vmatpush.msra.mxu0 %v29
    %53 = vmatpush.msra.mxu0 %v28
    %54 = vmatmul.f32.gmra.mxu0 %v36
    %v55 = vpop.f32.mrf.mxu0
    %v56 = vadd.f32 %v32, %v55
    %57 = vdwg.mxu0
    %vm58 = vcmask 58368
    %v59 = vsel %vm58, %v56, 0.0
    %v60 = vrot.slane %v59, 4
    %v61 = vadd.f32 %v59, %v60
    %v62 = vrot.slane %v61, 2
    %v63 = vadd.f32 %v61, %v62
    %v64 = vrot.slane %v63, 1
    %v65 = vadd.f32 %v63, %v64
    %v66 = vrcp.pop 2.0
    %v67 = vmul.f32 2.0, %v66
    %v68 = vsub.f32 1.0, %v67
    %v69 = vmul.f32 %v66, %v68
    %v70 = vadd.f32 %v66, %v69
    %vm71 = vweird.f32 %v66
    %v72 = vsel %vm71, %v66, %v70
    %v73 = vmul.f32 %v65, %v72
    %v74 = vsub.f32 %v56, %v73
    %v75 = vmul.f32 %v74, %v74
    %v76 = vsel %vm58, %v75, 0.0
    %v77 = vrot.slane %v76, 4
    %v78 = vadd.f32 %v76, %v77
    %v79 = vrot.slane %v78, 2
    %v80 = vadd.f32 %v78, %v79
    %v81 = vrot.slane %v80, 1
    %v82 = vadd.f32 %v80, %v81
    %v83 = vmul.f32 %v82, %v72
    %v84 = vadd.f32 %v83, 1e-05
    %v85 = vrsqrt.pop %v84
    %v86 = vmul.f32 %v85, %v84
    %v87 = vmul.f32 %v86, %v85
    %v88 = vmul.f32 0.5, %v87
    %v89 = vsub.f32 1.5, %v88
    %v90 = vmul.f32 %v85, %v89
    %vm91 = vweird.f32 %v84
    %vm92 = vweird.f32 %v85
    %vm93 = vmor %vm91, %vm92
    %v94 = vsel %vm93, %v85, %v90
    %v95 = vmul.f32 %v74, %v94
    %v96 = vld [vmem:[%s3] sm:$0x1]
    %v98 = vperm.slane %v96, 0
    %v100 = vmul.f32 %v95, %v98
    %v101 = vld [vmem:[%s4] sm:$0x1]
    %v103 = vperm.slane %v101, 0
    %v105 = vadd.f32 %v100, %v103
    %vm106 = vcmp.ge.f32.partialorder %v105, 0.0
    %v107 = vmul.f32 %v105, 0.2
    %v108 = vsel %vm106, %v105, %v107
    %v109 = vld [vmem:[%s5] sm:$0xff]
    %v110 = vld [vmem:[%s6] sm:$0x1]
    %v112 = vperm.slane %v110, 0
    %vm114 = vcmask 64512
    %v116 = vsel %vm114, %v108, 0
    %118 = vmatpush.msra.mxu0 0.0
    %119 = vmatpush.msra.mxu0 0.0
    %120 = vmatpush.msra.mxu0 0.0
    %121 = vmatpush.msra.mxu0 0.0
    %122 = vmatpush.msra.mxu0 0.0
    %123 = vmatpush.msra.mxu0 0.0
    %124 = vmatpush.msra.mxu0 0.0
    %125 = vmatpush.msra.mxu0 0.0
    %126 = vmatpush.msra.mxu0 0.0
    %127 = vmatpush.msra.mxu0 0.0
    %128 = vmatpush.msra.mxu0 0.0
    %129 = vmatpush.msra.mxu0 0.0
    %130 = vmatpush.msra.mxu0 0.0
    %131 = vmatpush.msra.mxu0 0.0
    %132 = vmatpush.msra.mxu0 0.0
    %133 = vmatpush.msra.mxu0 %v109
    %134 = vmatmul.f32.gmra.mxu0 %v116
    %v135 = vpop.f32.mrf.mxu0
    %v136 = vadd.f32 %v112, %v135
    %137 = vdwg.mxu0
    %v138 = vxor.u32 %v136, 2147483648
    %v139 = vmul.f32 %v138, 1.442695
    %v140 = vpow.pop %v139
    %v141 = vadd.f32 %v140, 1.0
    %v142 = vrcp.pop %v141
    %v143 = vmul.f32 %v141, %v142
    %v144 = vsub.f32 1.0, %v143
    %v145 = vmul.f32 %v142, %v144
    %v146 = vadd.f32 %v142, %v145
    %vm147 = vweird.f32 %v141
    %vm148 = vweird.f32 %v142
    %vm149 = vmor %vm147, %vm148
    %v150 = vsel %vm149, %v142, %v146
    %v151 = vand.u32 2147483647, %v141
    %vm152 = vcmp.eq.f32.partialorder %v151, 8.507059e+37
    %v153 = vand.u32 %v141, 2147483648
    %v154 = vor.u32 1.1754944e-38, %v153
    %v155 = vsel %vm152, %v154, %v150
    %v156 = vmul.f32 1.0, %v155
    %v157 = vadd.f32 %v156, 1.0
    %vm158 = vcmask 123904
    %159 = vst.msk [vmem:[#allocation2] sm:$0x3] %vm158, %v157
    // Predicated region
    $region30: #{tpu_custom_call.1} parent=1 // pred_check
      _
    $region31: #{tpu_custom_call.1} parent=1 // pred_check_branch
      %161 = sbr.rel (0) target = $region33
    $region32: #{tpu_custom_call.1} parent=1 // pred_region
      %163 = vsyncadd [#allocation3], 0
      %s165 = sshll.u32 [#allocation2], 4
      %s166 = int_to_ptr.vmem [resolvable:$true] %s165
      %s167 = sshll.u32 %s7, 4
      %s168 = int_to_ptr.hbm [resolvable:$true] %s167
      %170 = dma.vmem_to_hbm [thread:$0]  %s166, 32, %s168, [#allocation3]
    $region33: #{tpu_custom_call.1} parent=1 // pred_fallthru
      _
    // Predicated region
    $region34: #{tpu_custom_call.1} parent=1 // pred_check
      _
    $region35: #{tpu_custom_call.1} parent=1 // pred_check_branch
      %172 = sbr.rel (0) target = $region37
    $region36: #{tpu_custom_call.1} parent=1 // pred_region
      %174 = dma.done [#allocation3], 32
    $region37: #{tpu_custom_call.1} parent=1 // pred_fallthru
      _
    %175 = vsyncpa [#allocation3], 1

</llo_original>
